<compile_context>
chip_gen: v6e
topology: v6e:2x2x1
jax: 0.10.0
libtpu: 0.0.40
codegen_flags: <defaults>
</compile_context>

<pallas_src>
import jax
import jax.numpy as jnp
import numpy as np
from jax.experimental import pallas as pl
from jax.experimental.pallas import tpu as pltpu

# ----------------------------- configuration ------------------------------
EMBED_SIZE = 32
HEADS = 4                     # unused in forward (dead layers) -- kept for spec
NUM_LAYERS = 2                # unused in forward (dead layers)
FORWARD_EXPANSION = 4         # unused in forward (dead layers)
TRG_VOCAB = (20, 30)          # (trg_vocab_size[0], trg_vocab_size[1])
MAX_LENGTH = 16
VOCAB = TRG_VOCAB[0] + TRG_VOCAB[1]   # 50
VOCAB_PAD = 64                # sublane-friendly embedding-table rows
OUT_PAD = 128                 # lane-dense output width (>= 128)


# ------------------------------ fused kernel --------------------------------
def make_decoder_kernel(NT):
    """aidx/tidx -> one-hot -> word_emb (+ pos_emb) -> fc_out1 / fc_out2."""

    def kernel(aidx_ref, tidx_ref, wemb_ref, posb_ref,
               w1_ref, b1_ref, w2_ref, b2_ref,
               aout_ref, tout_ref):
        # Build one-hot (NT, VOCAB_PAD) selectors with an iota + compare, then do
        # the embedding "gather" as a single MXU matmul against the table.
        iota = jax.lax.broadcasted_iota(jnp.int32, (NT, VOCAB_PAD), 1)
        a_onehot = (iota == aidx_ref[...]).astype(jnp.float32)      # (NT, Vp)
        t_onehot = (iota == tidx_ref[...]).astype(jnp.float32)      # (NT, Vp)

        wemb = wemb_ref[...]                                        # (Vp, E)
        posb = posb_ref[...]                                        # (NT, E)
        ax = jnp.dot(a_onehot, wemb, preferred_element_type=jnp.float32) + posb
        tx = jnp.dot(t_onehot, wemb, preferred_element_type=jnp.float32) + posb

        # dropout = identity at eval; heads padded to 128 lanes -> unmasked vst
        aout_ref[...] = (jnp.dot(ax, w1_ref[...],
                                 preferred_element_type=jnp.float32) + b1_ref[...])
        tout_ref[...] = (jnp.dot(tx, w2_ref[...],
                                 preferred_element_type=jnp.float32) + b2_ref[...])

    return kernel


# --------------------------- parameter construction ------------------------
def _linear_params(key, in_dim, out_dim):
    kw, kb = jax.random.split(key)
    bound = 1.0 / (in_dim ** 0.5)
    w = jax.random.uniform(kw, (in_dim, out_dim), jnp.float32, -bound, bound)
    b = jax.random.uniform(kb, (1, out_dim), jnp.float32, -bound, bound)
    return w, b


def init_params(key):
    k_emb, k_pos, k1, k2 = jax.random.split(key, 4)
    E = EMBED_SIZE
    word = jax.random.normal(k_emb, (VOCAB, E), jnp.float32)        # nn.Embedding ~ N(0,1)
    pos = jax.random.normal(k_pos, (MAX_LENGTH, E), jnp.float32)
    w1, b1 = _linear_params(k1, E, TRG_VOCAB[0])
    w2, b2 = _linear_params(k2, E, TRG_VOCAB[1])
    # NOTE: self.layers (DecoderBlock / SelfAttention / TransformerBlock params)
    # are dead in Decoder.forward -- intentionally not constructed.
    return {
        "word_emb": word,
        "word_emb_pad": jnp.zeros((VOCAB_PAD, E), jnp.float32).at[:VOCAB].set(word),
        "pos_emb": pos,
        # fc heads pre-transposed to (in, out) and lane-padded to 128 columns
        "fc_out1_w": jnp.zeros((E, OUT_PAD), jnp.float32).at[:, :TRG_VOCAB[0]].set(w1),
        "fc_out1_b": jnp.zeros((1, OUT_PAD), jnp.float32).at[:, :TRG_VOCAB[0]].set(b1),
        "fc_out2_w": jnp.zeros((E, OUT_PAD), jnp.float32).at[:, :TRG_VOCAB[1]].set(w2),
        "fc_out2_b": jnp.zeros((1, OUT_PAD), jnp.float32).at[:, :TRG_VOCAB[1]].set(b2),
        # keep raw heads around for the pure-JAX reference check
        "_w1": w1, "_b1": b1, "_w2": w2, "_b2": b2,
    }


# -------------------------------- forward ----------------------------------
def decoder_forward(params, trg):
    """trg: (N, 2, T) int32 token pairs -> (aout (N,T,20), tout (N,T,30))."""
    N, _, T = trg.shape
    NT = N * T

    aidx = trg[:, 0, :].reshape(NT, 1).astype(jnp.int32)
    tidx = trg[:, 1, :].reshape(NT, 1).astype(jnp.int32)
    # position embedding broadcast (positions = arange(T) for every batch row)
    posb = jnp.tile(params["pos_emb"][:T], (N, 1))                  # (NT, E)

    vmem = pl.BlockSpec(memory_space=pltpu.MemorySpace.VMEM)
    apad, tpad = pl.pallas_call(
        make_decoder_kernel(NT),
        out_shape=(jax.ShapeDtypeStruct((NT, OUT_PAD), jnp.float32),
                   jax.ShapeDtypeStruct((NT, OUT_PAD), jnp.float32)),
        in_specs=[vmem] * 8,
        out_specs=(vmem, vmem),
    )(aidx, tidx, params["word_emb_pad"], posb,
      params["fc_out1_w"], params["fc_out1_b"],
      params["fc_out2_w"], params["fc_out2_b"])

    aout = apad[:, :TRG_VOCAB[0]].reshape(N, T, TRG_VOCAB[0])
    tout = tpad[:, :TRG_VOCAB[1]].reshape(N, T, TRG_VOCAB[1])
    return aout, tout


def decoder_forward_ref(params, trg):
    """Pure-JAX reference (same math as the PyTorch Decoder.forward)."""
    N, _, T = trg.shape
    pos = params["pos_emb"][:T][None, :, :]
    ax = params["word_emb"][trg[:, 0, :]] + pos
    tx = params["word_emb"][trg[:, 1, :]] + pos
    aout = ax @ params["_w1"] + params["_b1"][0]
    tout = tx @ params["_w2"] + params["_b2"][0]
    return aout, tout


# ---------------------------------- main ------------------------------------
if __name__ == "__main__":
    key = jax.random.PRNGKey(0)
    pkey, tkey = jax.random.split(key)
    params = init_params(pkey)

    N, T = 2, 8
    trg = jax.random.randint(tkey, (N, 2, T), 0, VOCAB, jnp.int32)

    aout, tout = jax.jit(decoder_forward)(params, trg)
    jax.block_until_ready((aout, tout))

    assert aout.shape == (N, T, TRG_VOCAB[0]) and aout.dtype == jnp.float32
    assert tout.shape == (N, T, TRG_VOCAB[1]) and tout.dtype == jnp.float32

    a_ref, t_ref = decoder_forward_ref(params, trg)
    np.testing.assert_allclose(np.asarray(aout), np.asarray(a_ref), rtol=1e-4, atol=1e-4)
    np.testing.assert_allclose(np.asarray(tout), np.asarray(t_ref), rtol=1e-4, atol=1e-4)

    print("KERNEL_OK")
</pallas_src>

<mosaic_0001>
module attributes {stable_mosaic.version = 11 : i64} {
  func.func @kernel(%arg0: memref<16x1xi32, #tpu.memory_space<vmem>>, %arg1: memref<16x1xi32, #tpu.memory_space<vmem>>, %arg2: memref<64x32xf32, #tpu.memory_space<vmem>>, %arg3: memref<16x32xf32, #tpu.memory_space<vmem>>, %arg4: memref<32x128xf32, #tpu.memory_space<vmem>>, %arg5: memref<1x128xf32, #tpu.memory_space<vmem>>, %arg6: memref<32x128xf32, #tpu.memory_space<vmem>>, %arg7: memref<1x128xf32, #tpu.memory_space<vmem>>, %arg8: memref<16x128xf32, #tpu.memory_space<vmem>>, %arg9: memref<16x128xf32, #tpu.memory_space<vmem>>) attributes {dimension_semantics = [], scalar_prefetch = 0 : i64, scratch_operands = 0 : i64, tpu.core_type = #tpu.core_type<tc>} {
    %0 = tpu.iota {dimensions = array<i32: 1>} : vector<16x64xi32>
    %c0 = arith.constant 0 : index
    %c0_0 = arith.constant 0 : index
    %1 = vector.load %arg0[%c0, %c0_0] : memref<16x1xi32, #tpu.memory_space<vmem>>, vector<16x1xi32>
    %2 = vector.broadcast %1 : vector<16x1xi32> to vector<16x64xi32>
    %3 = arith.cmpi eq, %0, %2 : vector<16x64xi32>
    %4 = arith.extui %3 : vector<16x64xi1> to vector<16x64xi32>
    %5 = arith.sitofp %4 : vector<16x64xi32> to vector<16x64xf32>
    %c0_1 = arith.constant 0 : index
    %c0_2 = arith.constant 0 : index
    %6 = vector.load %arg1[%c0_1, %c0_2] : memref<16x1xi32, #tpu.memory_space<vmem>>, vector<16x1xi32>
    %7 = vector.broadcast %6 : vector<16x1xi32> to vector<16x64xi32>
    %8 = arith.cmpi eq, %0, %7 : vector<16x64xi32>
    %9 = arith.extui %8 : vector<16x64xi1> to vector<16x64xi32>
    %10 = arith.sitofp %9 : vector<16x64xi32> to vector<16x64xf32>
    %c0_3 = arith.constant 0 : index
    %c0_4 = arith.constant 0 : index
    %11 = vector.load %arg2[%c0_3, %c0_4] : memref<64x32xf32, #tpu.memory_space<vmem>>, vector<64x32xf32>
    %c0_5 = arith.constant 0 : index
    %c0_6 = arith.constant 0 : index
    %12 = vector.load %arg3[%c0_5, %c0_6] : memref<16x32xf32, #tpu.memory_space<vmem>>, vector<16x32xf32>
    %cst = arith.constant dense<0.000000e+00> : vector<16x32xf32>
    %13 = tpu.matmul %5, %11, %cst {dimension_numbers = #tpu.dot_dimension_numbers<[1], [0], [0], [1], [0, 0, 1, 1], [], []>} : vector<16x64xf32>, vector<64x32xf32>, vector<16x32xf32> -> vector<16x32xf32>
    %14 = arith.addf %13, %12 : vector<16x32xf32>
    %cst_7 = arith.constant dense<0.000000e+00> : vector<16x32xf32>
    %15 = tpu.matmul %10, %11, %cst_7 {dimension_numbers = #tpu.dot_dimension_numbers<[1], [0], [0], [1], [0, 0, 1, 1], [], []>} : vector<16x64xf32>, vector<64x32xf32>, vector<16x32xf32> -> vector<16x32xf32>
    %16 = arith.addf %15, %12 : vector<16x32xf32>
    %c0_8 = arith.constant 0 : index
    %c0_9 = arith.constant 0 : index
    %17 = vector.load %arg4[%c0_8, %c0_9] : memref<32x128xf32, #tpu.memory_space<vmem>>, vector<32x128xf32>
    %cst_10 = arith.constant dense<0.000000e+00> : vector<16x128xf32>
    %18 = tpu.matmul %14, %17, %cst_10 {dimension_numbers = #tpu.dot_dimension_numbers<[1], [0], [0], [1], [0, 0, 1, 1], [], []>} : vector<16x32xf32>, vector<32x128xf32>, vector<16x128xf32> -> vector<16x128xf32>
    %c0_11 = arith.constant 0 : index
    %c0_12 = arith.constant 0 : index
    %19 = vector.load %arg5[%c0_11, %c0_12] : memref<1x128xf32, #tpu.memory_space<vmem>>, vector<1x128xf32>
    %20 = vector.broadcast %19 : vector<1x128xf32> to vector<16x128xf32>
    %21 = arith.addf %18, %20 : vector<16x128xf32>
    %c0_13 = arith.constant 0 : index
    %c0_14 = arith.constant 0 : index
    %22 = vector.load %arg8[%c0_13, %c0_14] : memref<16x128xf32, #tpu.memory_space<vmem>>, vector<16x128xf32>
    tpu.vector_store %arg8[%c0_13, %c0_14], %21 {strides = array<i32>} : memref<16x128xf32, #tpu.memory_space<vmem>>, vector<16x128xf32>,
    %c0_15 = arith.constant 0 : index
    %c0_16 = arith.constant 0 : index
    %23 = vector.load %arg6[%c0_15, %c0_16] : memref<32x128xf32, #tpu.memory_space<vmem>>, vector<32x128xf32>
    %cst_17 = arith.constant dense<0.000000e+00> : vector<16x128xf32>
    %24 = tpu.matmul %16, %23, %cst_17 {dimension_numbers = #tpu.dot_dimension_numbers<[1], [0], [0], [1], [0, 0, 1, 1], [], []>} : vector<16x32xf32>, vector<32x128xf32>, vector<16x128xf32> -> vector<16x128xf32>
    %c0_18 = arith.constant 0 : index
    %c0_19 = arith.constant 0 : index
    %25 = vector.load %arg7[%c0_18, %c0_19] : memref<1x128xf32, #tpu.memory_space<vmem>>, vector<1x128xf32>
    %26 = vector.broadcast %25 : vector<1x128xf32> to vector<16x128xf32>
    %27 = arith.addf %24, %26 : vector<16x128xf32>
    %c0_20 = arith.constant 0 : index
    %c0_21 = arith.constant 0 : index
    %28 = vector.load %arg9[%c0_20, %c0_21] : memref<16x128xf32, #tpu.memory_space<vmem>>, vector<16x128xf32>
    tpu.vector_store %arg9[%c0_20, %c0_21], %27 {strides = array<i32>} : memref<16x128xf32, #tpu.memory_space<vmem>>, vector<16x128xf32>,
    return
  }
}

</mosaic_0001>

<llo_original>
// kernel: squeeze.1
$region0: #{squeeze.1}
  %s0 = inlined_call_operand.vmem [shape: s32[2,8], index: 0, kind: input, shape index: {}]
  %s1 = inlined_call_operand.vmem [shape: s32[16,1], index: 1, kind: output, shape index: {}]
  $region1: #{squeeze.1} parent=0
    #allocation0 [shape = 'u8[4096]{0}', space=vmem, size = 0x1000, scoped, tag = 'scoped mem for input reshape']
    %s3 = sshll.u32 1, 2
    %s4 = ssub.s32 %s3, 1
    %v5 = vld [vmem:[%s0] sm:%s4]
    %6 = vst [vmem:[#allocation0] sm:%s4] %v5
    %v7 = vld [vmem:[#allocation0] sm:$0x3]
    %vm8 = vcmask 7168
    %9 = vst.msk [vmem:[%s1] ss:$8 sm:$0x3] %vm8, %v7
    %v10 = vld [vmem:[#allocation0] sm:$0x3]
    %11 = vrot.lane.b32.xlu0 %v10, 127
    %v12 = vpop.permute.xlu0 %11
    %vm13 = vcmask 7168
    %s14 = scalar_lea.vmem %s1, 1
    %15 = vst.msk [vmem:[%s14] ss:$8 sm:$0x3] %vm13, %v12
    %v16 = vld [vmem:[#allocation0] sm:$0x3]
    %17 = vrot.lane.b32.xlu0 %v16, 126
    %v18 = vpop.permute.xlu0 %17
    %vm19 = vcmask 7168
    %s20 = scalar_lea.vmem %s1, 2
    %21 = vst.msk [vmem:[%s20] ss:$8 sm:$0x3] %vm19, %v18
    %v22 = vld [vmem:[#allocation0] sm:$0x3]
    %23 = vrot.lane.b32.xlu0 %v22, 125
    %v24 = vpop.permute.xlu0 %23
    %vm25 = vcmask 7168
    %s26 = scalar_lea.vmem %s1, 3
    %27 = vst.msk [vmem:[%s26] ss:$8 sm:$0x3] %vm25, %v24
    %v28 = vld [vmem:[#allocation0] sm:$0x3]
    %29 = vrot.lane.b32.xlu0 %v28, 124
    %v30 = vpop.permute.xlu0 %29
    %vm31 = vcmask 7168
    %s32 = scalar_lea.vmem %s1, 4
    %33 = vst.msk [vmem:[%s32] ss:$8 sm:$0x3] %vm31, %v30
    %v34 = vld [vmem:[#allocation0] sm:$0x3]
    %35 = vrot.lane.b32.xlu0 %v34, 123
    %v36 = vpop.permute.xlu0 %35
    %vm37 = vcmask 7168
    %s38 = scalar_lea.vmem %s1, 5
    %39 = vst.msk [vmem:[%s38] ss:$8 sm:$0x3] %vm37, %v36
    %v40 = vld [vmem:[#allocation0] sm:$0x3]
    %41 = vrot.lane.b32.xlu0 %v40, 122
    %v42 = vpop.permute.xlu0 %41
    %vm43 = vcmask 7168
    %s44 = scalar_lea.vmem %s1, 6
    %45 = vst.msk [vmem:[%s44] ss:$8 sm:$0x3] %vm43, %v42
    %v46 = vld [vmem:[#allocation0] sm:$0x3]
    %47 = vrot.lane.b32.xlu0 %v46, 121
    %v48 = vpop.permute.xlu0 %47
    %vm49 = vcmask 7168
    %s50 = scalar_lea.vmem %s1, 7
    %51 = vst.msk [vmem:[%s50] ss:$8 sm:$0x3] %vm49, %v48

// kernel: decoder_forward.1
$region0: #{decoder_forward.1}
  #allocation0 [shape = 'u32[]', space=smem, size = 0x4, offset = 0x4, fixed_abs, tag = 'smem constant byte address 0x4 - core index']
  #allocation1 [shape = 'u32[144,128]{1,0:T(1,128)}', space=vmem, size = 0x12000, scoped, tag = 'internal scratch']
  %s0 = inlined_call_operand.vmem [shape: s32[16,1], index: 0, kind: input, shape index: {}]
  %s1 = inlined_call_operand.vmem [shape: s32[16,1], index: 1, kind: input, shape index: {}]
  %s2 = inlined_call_operand.vmem [shape: f32[64,32], index: 2, kind: input, shape index: {}]
  %s3 = inlined_call_operand.vmem [shape: f32[16,32], index: 3, kind: input, shape index: {}]
  %s4 = inlined_call_operand.vmem [shape: f32[32,128], index: 4, kind: input, shape index: {}]
  %s5 = inlined_call_operand.vmem [shape: f32[1,128], index: 5, kind: input, shape index: {}]
  %s6 = inlined_call_operand.vmem [shape: f32[32,128], index: 6, kind: input, shape index: {}]
  %s7 = inlined_call_operand.vmem [shape: f32[1,128], index: 7, kind: input, shape index: {}]
  %s8 = inlined_call_operand.vmem [shape: f32[16,128], index: 8, kind: output, shape index: {0}]
  %s9 = inlined_call_operand.vmem [shape: f32[16,128], index: 9, kind: output, shape index: {1}]
  %10 = xla_tuple %s8, %s9
  %s11 = sld [smem:[#allocation0]]
  $region50: #{decoder_forward.1} parent=0
    _
  %s13 = ssub.s32 1, %s11
  %s14 = scalar_select 0, %s13, %s11
  // Predicated region
  $region2: #{decoder_forward.1} parent=0 // pred_check
    _
  $region3: #{decoder_forward.1} parent=0 // pred_check_branch
    %16 = sbr.rel (0) target = $region5
  $region4: #{decoder_forward.1} parent=0 // pred_region
    _
  $region5: #{decoder_forward.1} parent=0 // pred_fallthru
    _
  // Predicated region
  $region6: #{decoder_forward.1} parent=0 // pred_check
    _
  $region7: #{decoder_forward.1} parent=0 // pred_check_branch
    %18 = sbr.rel (0) target = $region9
  $region8: #{decoder_forward.1} parent=0 // pred_region
    _
  $region9: #{decoder_forward.1} parent=0 // pred_fallthru
    _
  // Predicated region
  $region10: #{decoder_forward.1} parent=0 // pred_check
    _
  $region11: #{decoder_forward.1} parent=0 // pred_check_branch
    %20 = sbr.rel (0) target = $region13
  $region12: #{decoder_forward.1} parent=0 // pred_region
    _
  $region13: #{decoder_forward.1} parent=0 // pred_fallthru
    _
  // Predicated region
  $region14: #{decoder_forward.1} parent=0 // pred_check
    _
  $region15: #{decoder_forward.1} parent=0 // pred_check_branch
    %22 = sbr.rel (0) target = $region17
  $region16: #{decoder_forward.1} parent=0 // pred_region
    _
  $region17: #{decoder_forward.1} parent=0 // pred_fallthru
    _
  // Predicated region
  $region18: #{decoder_forward.1} parent=0 // pred_check
    _
  $region19: #{decoder_forward.1} parent=0 // pred_check_branch
    %24 = sbr.rel (0) target = $region21
  $region20: #{decoder_forward.1} parent=0 // pred_region
    _
  $region21: #{decoder_forward.1} parent=0 // pred_fallthru
    _
  // Predicated region
  $region22: #{decoder_forward.1} parent=0 // pred_check
    _
  $region23: #{decoder_forward.1} parent=0 // pred_check_branch
    %26 = sbr.rel (0) target = $region25
  $region24: #{decoder_forward.1} parent=0 // pred_region
    _
  $region25: #{decoder_forward.1} parent=0 // pred_fallthru
    _
  // Predicated region
  $region26: #{decoder_forward.1} parent=0 // pred_check
    _
  $region27: #{decoder_forward.1} parent=0 // pred_check_branch
    %28 = sbr.rel (0) target = $region29
  $region28: #{decoder_forward.1} parent=0 // pred_region
    _
  $region29: #{decoder_forward.1} parent=0 // pred_fallthru
    _
  // Predicated region
  $region30: #{decoder_forward.1} parent=0 // pred_check
    _
  $region31: #{decoder_forward.1} parent=0 // pred_check_branch
    %30 = sbr.rel (0) target = $region33
  $region32: #{decoder_forward.1} parent=0 // pred_region
    _
  $region33: #{decoder_forward.1} parent=0 // pred_fallthru
    _
  %v31 = vlaneseq
  %v32 = vand.u32 %v31, 127
  %v33 = vld [vmem:[%s0] sm:$0xff]
  %v34 = vld [vmem:[%s0 + $0x8] sm:$0xff]
  %35 = vset.pattern.permute.xlu0 0
  %36 = vperm.xlu0 %35, %v33
  %v37 = vpop.permute.xlu0 %36
  %38 = vset.pattern.permute.xlu0 0
  %39 = vperm.xlu0 %38, %v34
  %v40 = vpop.permute.xlu0 %39
  %vm41 = vcmp.eq.s32.totalorder %v32, %v37
  %vm42 = vcmp.eq.s32.totalorder %v32, %v40
  %v43 = vsel %vm41, 1, 0
  %v44 = vsel %vm42, 1, 0
  %v45 = vcvt.s32.f32 %v43
  %v46 = vcvt.s32.f32 %v44
  %v47 = vld [vmem:[%s1] sm:$0xff]
  %v48 = vld [vmem:[%s1 + $0x8] sm:$0xff]
  %49 = vset.pattern.permute.xlu0 0
  %50 = vperm.xlu0 %49, %v47
  %v51 = vpop.permute.xlu0 %50
  %52 = vset.pattern.permute.xlu0 0
  %53 = vperm.xlu0 %52, %v48
  %v54 = vpop.permute.xlu0 %53
  %vm55 = vcmp.eq.s32.totalorder %v32, %v51
  %vm56 = vcmp.eq.s32.totalorder %v32, %v54
  %v57 = vsel %vm55, 1, 0
  %v58 = vsel %vm56, 1, 0
  %v59 = vcvt.s32.f32 %v57
  %v60 = vcvt.s32.f32 %v58
  %v61 = vld [vmem:[%s2] sm:$0xff]
  %v62 = vld [vmem:[%s2 + $0x8] sm:$0xff]
  %v63 = vld [vmem:[%s2 + $0x10] sm:$0xff]
  %v64 = vld [vmem:[%s2 + $0x18] sm:$0xff]
  %v65 = vld [vmem:[%s2 + $0x20] sm:$0xff]
  %v66 = vld [vmem:[%s2 + $0x28] sm:$0xff]
  %v67 = vld [vmem:[%s2 + $0x30] sm:$0xff]
  %v68 = vld [vmem:[%s2 + $0x38] sm:$0xff]
  %v69 = vld [vmem:[%s3] sm:$0xff]
  %v70 = vld [vmem:[%s3 + $0x8] sm:$0xff]
  %vm71 = vcmask 523264
  %v73 = vsel %vm71, %v45, 0
  %v76 = vsel %vm71, %v46, 0
  %78 = vmatprep.subr.mxu0 0.0
  %79 = vmatpush1.msra.mxu0 0.0
  %80 = vmatprep.subr.mxu0 0.0
  %81 = vmatpush1.msra.mxu0 0.0
  %82 = vmatprep.subr.mxu0 0.0
  %83 = vmatpush1.msra.mxu0 0.0
  %84 = vmatprep.subr.mxu0 0.0
  %85 = vmatpush1.msra.mxu0 0.0
  %86 = vmatprep.subr.mxu0 0.0
  %87 = vmatpush1.msra.mxu0 0.0
  %88 = vmatprep.subr.mxu0 0.0
  %89 = vmatpush1.msra.mxu0 0.0
  %90 = vmatprep.subr.mxu0 0.0
  %91 = vmatpush1.msra.mxu0 0.0
  %92 = vmatprep.subr.mxu0 0.0
  %93 = vmatpush1.msra.mxu0 0.0
  %94 = vmatprep.subr.mxu0 0.0
  %95 = vmatpush1.msra.mxu0 %v68
  %96 = vmatprep.subr.mxu0 0.0
  %97 = vmatpush1.msra.mxu0 %v67
  %98 = vmatprep.subr.mxu0 0.0
  %99 = vmatpush1.msra.mxu0 %v66
  %100 = vmatprep.subr.mxu0 0.0
  %101 = vmatpush1.msra.mxu0 %v65
  %102 = vmatprep.subr.mxu0 0.0
  %103 = vmatpush1.msra.mxu0 %v64
  %104 = vmatprep.subr.mxu0 0.0
  %105 = vmatpush1.msra.mxu0 %v63
  %106 = vmatprep.subr.mxu0 0.0
  %107 = vmatpush1.msra.mxu0 %v62
  %108 = vmatprep.subr.mxu0 0.0
  %109 = vmatpush1.msra.mxu0 %v61
  %110 = vmatprep.subr.mxu0 0.0
  %111 = vmatpush2.msra.mxu0 0.0
  %112 = vmatprep.subr.mxu0 0.0
  %113 = vmatpush2.msra.mxu0 0.0
  %114 = vmatprep.subr.mxu0 0.0
  %115 = vmatpush2.msra.mxu0 0.0
  %116 = vmatprep.subr.mxu0 0.0
  %117 = vmatpush2.msra.mxu0 0.0
  %118 = vmatprep.subr.mxu0 0.0
  %119 = vmatpush2.msra.mxu0 0.0
  %120 = vmatprep.subr.mxu0 0.0
  %121 = vmatpush2.msra.mxu0 0.0
  %122 = vmatprep.subr.mxu0 0.0
  %123 = vmatpush2.msra.mxu0 0.0
  %124 = vmatprep.subr.mxu0 0.0
  %125 = vmatpush2.msra.mxu0 0.0
  %126 = vmatprep.subr.mxu0 0.0
  %127 = vmatpush2.msra.mxu0 0.0
  %128 = vmatprep.subr.mxu0 0.0
  %129 = vmatpush2.msra.mxu0 0.0
  %130 = vmatprep.subr.mxu0 0.0
  %131 = vmatpush2.msra.mxu0 0.0
  %132 = vmatprep.subr.mxu0 0.0
  %133 = vmatpush2.msra.mxu0 0.0
  %134 = vmatprep.subr.mxu0 0.0
  %135 = vmatpush2.msra.mxu0 0.0
  %136 = vmatprep.subr.mxu0 0.0
  %137 = vmatpush2.msra.mxu0 0.0
  %138 = vmatprep.subr.mxu0 0.0
  %139 = vmatpush2.msra.mxu0 0.0
  %140 = vmatprep.subr.mxu0 0.0
  %141 = vmatpush2.msra.mxu0 0.0
  %142 = vmatprep.mubr.f32.mxu0 0.0
  %143 = vmatmul.mubr.f32.gmra.mxu0 %v73
  %v144 = vpop.f32.mrf.mxu0
  %v145 = vadd.f32 %v69, %v144
  %v146 = vpop.f32.mrf.mxu0
  %147 = vmatprep.mubr.f32.mxu0 0.0
  %148 = vmatmul.mubr.f32.gmra.mxu0 %v76
  %v149 = vpop.f32.mrf.mxu0
  %v150 = vadd.f32 %v70, %v149
  %v151 = vpop.f32.mrf.mxu0
  %152 = vdwg.mxu0
  %v154 = vsel %vm71, %v59, 0
  %v157 = vsel %vm71, %v60, 0
  %159 = vmatprep.subr.mxu0 0.0
  %160 = vmatpush1.msra.mxu0 0.0
  %161 = vmatprep.subr.mxu0 0.0
  %162 = vmatpush1.msra.mxu0 0.0
  %163 = vmatprep.subr.mxu0 0.0
  %164 = vmatpush1.msra.mxu0 0.0
  %165 = vmatprep.subr.mxu0 0.0
  %166 = vmatpush1.msra.mxu0 0.0
  %167 = vmatprep.subr.mxu0 0.0
  %168 = vmatpush1.msra.mxu0 0.0
  %169 = vmatprep.subr.mxu0 0.0
  %170 = vmatpush1.msra.mxu0 0.0
  %171 = vmatprep.subr.mxu0 0.0
  %172 = vmatpush1.msra.mxu0 0.0
  %173 = vmatprep.subr.mxu0 0.0
  %174 = vmatpush1.msra.mxu0 0.0
  %175 = vmatprep.subr.mxu0 0.0
  %176 = vmatpush1.msra.mxu0 %v68
  %177 = vmatprep.subr.mxu0 0.0
  %178 = vmatpush1.msra.mxu0 %v67
  %179 = vmatprep.subr.mxu0 0.0
  %180 = vmatpush1.msra.mxu0 %v66
  %181 = vmatprep.subr.mxu0 0.0
  %182 = vmatpush1.msra.mxu0 %v65
  %183 = vmatprep.subr.mxu0 0.0
  %184 = vmatpush1.msra.mxu0 %v64
  %185 = vmatprep.subr.mxu0 0.0
  %186 = vmatpush1.msra.mxu0 %v63
  %187 = vmatprep.subr.mxu0 0.0
  %188 = vmatpush1.msra.mxu0 %v62
  %189 = vmatprep.subr.mxu0 0.0
  %190 = vmatpush1.msra.mxu0 %v61
  %191 = vmatprep.subr.mxu0 0.0
  %192 = vmatpush2.msra.mxu0 0.0
  %193 = vmatprep.subr.mxu0 0.0
  %194 = vmatpush2.msra.mxu0 0.0
  %195 = vmatprep.subr.mxu0 0.0
  %196 = vmatpush2.msra.mxu0 0.0
  %197 = vmatprep.subr.mxu0 0.0
  %198 = vmatpush2.msra.mxu0 0.0
  %199 = vmatprep.subr.mxu0 0.0
  %200 = vmatpush2.msra.mxu0 0.0
  %201 = vmatprep.subr.mxu0 0.0
  %202 = vmatpush2.msra.mxu0 0.0
  %203 = vmatprep.subr.mxu0 0.0
  %204 = vmatpush2.msra.mxu0 0.0
  %205 = vmatprep.subr.mxu0 0.0
  %206 = vmatpush2.msra.mxu0 0.0
  %207 = vmatprep.subr.mxu0 0.0
  %208 = vmatpush2.msra.mxu0 0.0
  %209 = vmatprep.subr.mxu0 0.0
  %210 = vmatpush2.msra.mxu0 0.0
  %211 = vmatprep.subr.mxu0 0.0
  %212 = vmatpush2.msra.mxu0 0.0
  %213 = vmatprep.subr.mxu0 0.0
  %214 = vmatpush2.msra.mxu0 0.0
  %215 = vmatprep.subr.mxu0 0.0
  %216 = vmatpush2.msra.mxu0 0.0
  %217 = vmatprep.subr.mxu0 0.0
  %218 = vmatpush2.msra.mxu0 0.0
  %219 = vmatprep.subr.mxu0 0.0
  %220 = vmatpush2.msra.mxu0 0.0
  %221 = vmatprep.subr.mxu0 0.0
  %222 = vmatpush2.msra.mxu0 0.0
  %223 = vmatprep.mubr.f32.mxu0 0.0
  %224 = vmatmul.mubr.f32.gmra.mxu0 %v154
  %v225 = vpop.f32.mrf.mxu0
  %v226 = vadd.f32 %v69, %v225
  %v227 = vpop.f32.mrf.mxu0
  %228 = vmatprep.mubr.f32.mxu0 0.0
  %229 = vmatmul.mubr.f32.gmra.mxu0 %v157
  %v230 = vpop.f32.mrf.mxu0
  %v231 = vadd.f32 %v70, %v230
  %v232 = vpop.f32.mrf.mxu0
  %233 = vdwg.mxu0
  %v234 = vld [vmem:[%s4] sm:$0xff]
  %v235 = vld [vmem:[%s4 + $0x8] sm:$0xff]
  %v236 = vld [vmem:[%s4 + $0x10] sm:$0xff]
  %v237 = vld [vmem:[%s4 + $0x18] sm:$0xff]
  %v238 = vld [vmem:[%s5] sm:$0x1]
  %v240 = vlaneseq
  %v241 = vshrl.u32 %v240, 7
  %v242 = vsub.s32 0, %v241
  %v243 = vrot.slane %v238, %v242
  %vm245 = vcmask 261120
  %v247 = vsel %vm245, %v145, 0
  %v250 = vsel %vm245, %v150, 0
  %252 = vmatprep.subr.mxu0 0.0
  %253 = vmatpush1.msra.mxu0 0.0
  %254 = vmatprep.subr.mxu0 0.0
  %255 = vmatpush1.msra.mxu0 0.0
  %256 = vmatprep.subr.mxu0 0.0
  %257 = vmatpush1.msra.mxu0 0.0
  %258 = vmatprep.subr.mxu0 0.0
  %259 = vmatpush1.msra.mxu0 0.0
  %260 = vmatprep.subr.mxu0 0.0
  %261 = vmatpush1.msra.mxu0 0.0
  %262 = vmatprep.subr.mxu0 0.0
  %263 = vmatpush1.msra.mxu0 0.0
  %264 = vmatprep.subr.mxu0 0.0
  %265 = vmatpush1.msra.mxu0 0.0
  %266 = vmatprep.subr.mxu0 0.0
  %267 = vmatpush1.msra.mxu0 0.0
  %268 = vmatprep.subr.mxu0 0.0
  %269 = vmatpush1.msra.mxu0 0.0
  %270 = vmatprep.subr.mxu0 0.0
  %271 = vmatpush1.msra.mxu0 0.0
  %272 = vmatprep.subr.mxu0 0.0
  %273 = vmatpush1.msra.mxu0 0.0
  %274 = vmatprep.subr.mxu0 0.0
  %275 = vmatpush1.msra.mxu0 0.0
  %276 = vmatprep.subr.mxu0 0.0
  %277 = vmatpush1.msra.mxu0 %v237
  %278 = vmatprep.subr.mxu0 0.0
  %279 = vmatpush1.msra.mxu0 %v236
  %280 = vmatprep.subr.mxu0 0.0
  %281 = vmatpush1.msra.mxu0 %v235
  %282 = vmatprep.subr.mxu0 0.0
  %283 = vmatpush1.msra.mxu0 %v234
  %284 = vmatprep.subr.mxu0 0.0
  %285 = vmatpush2.msra.mxu0 0.0
  %286 = vmatprep.subr.mxu0 0.0
  %287 = vmatpush2.msra.mxu0 0.0
  %288 = vmatprep.subr.mxu0 0.0
  %289 = vmatpush2.msra.mxu0 0.0
  %290 = vmatprep.subr.mxu0 0.0
  %291 = vmatpush2.msra.mxu0 0.0
  %292 = vmatprep.subr.mxu0 0.0
  %293 = vmatpush2.msra.mxu0 0.0
  %294 = vmatprep.subr.mxu0 0.0
  %295 = vmatpush2.msra.mxu0 0.0
  %296 = vmatprep.subr.mxu0 0.0
  %297 = vmatpush2.msra.mxu0 0.0
  %298 = vmatprep.subr.mxu0 0.0
  %299 = vmatpush2.msra.mxu0 0.0
  %300 = vmatprep.subr.mxu0 0.0
  %301 = vmatpush2.msra.mxu0 0.0
  %302 = vmatprep.subr.mxu0 0.0
  %303 = vmatpush2.msra.mxu0 0.0
  %304 = vmatprep.subr.mxu0 0.0
  %305 = vmatpush2.msra.mxu0 0.0
  %306 = vmatprep.subr.mxu0 0.0
  %307 = vmatpush2.msra.mxu0 0.0
  %308 = vmatprep.subr.mxu0 0.0
  %309 = vmatpush2.msra.mxu0 0.0
  %310 = vmatprep.subr.mxu0 0.0
  %311 = vmatpush2.msra.mxu0 0.0
  %312 = vmatprep.subr.mxu0 0.0
  %313 = vmatpush2.msra.mxu0 0.0
  %314 = vmatprep.subr.mxu0 0.0
  %315 = vmatpush2.msra.mxu0 0.0
  %316 = vmatprep.mubr.f32.mxu0 0.0
  %317 = vmatmul.mubr.f32.gmra.mxu0 %v247
  %v318 = vpop.f32.mrf.mxu0
  %v319 = vadd.f32 %v243, %v318
  %v320 = vpop.f32.mrf.mxu0
  %321 = vmatprep.mubr.f32.mxu0 0.0
  %322 = vmatmul.mubr.f32.gmra.mxu0 %v250
  %v323 = vpop.f32.mrf.mxu0
  %v324 = vadd.f32 %v243, %v323
  %v325 = vpop.f32.mrf.mxu0
  %326 = vdwg.mxu0
  %327 = vst [vmem:[%s8] sm:$0xff] %v319
  %328 = vst [vmem:[%s8 + $0x8] sm:$0xff] %v324
  %v329 = vld [vmem:[%s6] sm:$0xff]
  %v330 = vld [vmem:[%s6 + $0x8] sm:$0xff]
  %v331 = vld [vmem:[%s6 + $0x10] sm:$0xff]
  %v332 = vld [vmem:[%s6 + $0x18] sm:$0xff]
  %v333 = vld [vmem:[%s7] sm:$0x1]
  %v335 = vlaneseq
  %v336 = vshrl.u32 %v335, 7
  %v337 = vsub.s32 0, %v336
  %v338 = vrot.slane %v333, %v337
  %v341 = vsel %vm245, %v226, 0
  %v344 = vsel %vm245, %v231, 0
  %346 = vmatprep.subr.mxu0 0.0
  %347 = vmatpush1.msra.mxu0 0.0
  %348 = vmatprep.subr.mxu0 0.0
  %349 = vmatpush1.msra.mxu0 0.0
  %350 = vmatprep.subr.mxu0 0.0
  %351 = vmatpush1.msra.mxu0 0.0
  %352 = vmatprep.subr.mxu0 0.0
  %353 = vmatpush1.msra.mxu0 0.0
  %354 = vmatprep.subr.mxu0 0.0
  %355 = vmatpush1.msra.mxu0 0.0
  %356 = vmatprep.subr.mxu0 0.0
  %357 = vmatpush1.msra.mxu0 0.0
  %358 = vmatprep.subr.mxu0 0.0
  %359 = vmatpush1.msra.mxu0 0.0
  %360 = vmatprep.subr.mxu0 0.0
  %361 = vmatpush1.msra.mxu0 0.0
  %362 = vmatprep.subr.mxu0 0.0
  %363 = vmatpush1.msra.mxu0 0.0
  %364 = vmatprep.subr.mxu0 0.0
  %365 = vmatpush1.msra.mxu0 0.0
  %366 = vmatprep.subr.mxu0 0.0
  %367 = vmatpush1.msra.mxu0 0.0
  %368 = vmatprep.subr.mxu0 0.0
  %369 = vmatpush1.msra.mxu0 0.0
  %370 = vmatprep.subr.mxu0 0.0
  %371 = vmatpush1.msra.mxu0 %v332
  %372 = vmatprep.subr.mxu0 0.0
  %373 = vmatpush1.msra.mxu0 %v331
  %374 = vmatprep.subr.mxu0 0.0
  %375 = vmatpush1.msra.mxu0 %v330
  %376 = vmatprep.subr.mxu0 0.0
  %377 = vmatpush1.msra.mxu0 %v329
  %378 = vmatprep.subr.mxu0 0.0
  %379 = vmatpush2.msra.mxu0 0.0
  %380 = vmatprep.subr.mxu0 0.0
  %381 = vmatpush2.msra.mxu0 0.0
  %382 = vmatprep.subr.mxu0 0.0
  %383 = vmatpush2.msra.mxu0 0.0
  %384 = vmatprep.subr.mxu0 0.0
  %385 = vmatpush2.msra.mxu0 0.0
  %386 = vmatprep.subr.mxu0 0.0
  %387 = vmatpush2.msra.mxu0 0.0
  %388 = vmatprep.subr.mxu0 0.0
  %389 = vmatpush2.msra.mxu0 0.0
  %390 = vmatprep.subr.mxu0 0.0
  %391 = vmatpush2.msra.mxu0 0.0
  %392 = vmatprep.subr.mxu0 0.0
  %393 = vmatpush2.msra.mxu0 0.0
  %394 = vmatprep.subr.mxu0 0.0
  %395 = vmatpush2.msra.mxu0 0.0
  %396 = vmatprep.subr.mxu0 0.0
  %397 = vmatpush2.msra.mxu0 0.0
  %398 = vmatprep.subr.mxu0 0.0
  %399 = vmatpush2.msra.mxu0 0.0
  %400 = vmatprep.subr.mxu0 0.0
  %401 = vmatpush2.msra.mxu0 0.0
  %402 = vmatprep.subr.mxu0 0.0
  %403 = vmatpush2.msra.mxu0 0.0
  %404 = vmatprep.subr.mxu0 0.0
  %405 = vmatpush2.msra.mxu0 0.0
  %406 = vmatprep.subr.mxu0 0.0
  %407 = vmatpush2.msra.mxu0 0.0
  %408 = vmatprep.subr.mxu0 0.0
  %409 = vmatpush2.msra.mxu0 0.0
  %410 = vmatprep.mubr.f32.mxu0 0.0
  %411 = vmatmul.mubr.f32.gmra.mxu0 %v341
  %v412 = vpop.f32.mrf.mxu0
  %v413 = vadd.f32 %v338, %v412
  %v414 = vpop.f32.mrf.mxu0
  %415 = vmatprep.mubr.f32.mxu0 0.0
  %416 = vmatmul.mubr.f32.gmra.mxu0 %v344
  %v417 = vpop.f32.mrf.mxu0
  %v418 = vadd.f32 %v338, %v417
  %v419 = vpop.f32.mrf.mxu0
  %420 = vdwg.mxu0
  %421 = vst [vmem:[%s9] sm:$0xff] %v413
  %422 = vst [vmem:[%s9 + $0x8] sm:$0xff] %v418
  // Predicated region
  $region34: #{decoder_forward.1} parent=0 // pred_check
    _
  $region35: #{decoder_forward.1} parent=0 // pred_check_branch
    %424 = sbr.rel (0) target = $region37
  $region36: #{decoder_forward.1} parent=0 // pred_region
    _
  $region37: #{decoder_forward.1} parent=0 // pred_fallthru
    _
  // Predicated region
  $region38: #{decoder_forward.1} parent=0 // pred_check
    _
  $region39: #{decoder_forward.1} parent=0 // pred_check_branch
    %426 = sbr.rel (0) target = $region41
  $region40: #{decoder_forward.1} parent=0 // pred_region
    _
  $region41: #{decoder_forward.1} parent=0 // pred_fallthru
    _
  // Predicated region
  $region42: #{decoder_forward.1} parent=0 // pred_check
    _
  $region43: #{decoder_forward.1} parent=0 // pred_check_branch
    %428 = sbr.rel (0) target = $region45
  $region44: #{decoder_forward.1} parent=0 // pred_region
    _
  $region45: #{decoder_forward.1} parent=0 // pred_fallthru
    _
  // Predicated region
  $region46: #{decoder_forward.1} parent=0 // pred_check
    _
  $region47: #{decoder_forward.1} parent=0 // pred_check_branch
    %430 = sbr.rel (0) target = $region49
  $region48: #{decoder_forward.1} parent=0 // pred_region
    _
  $region49: #{decoder_forward.1} parent=0 // pred_fallthru
    _

</llo_original>
